<compile_context>
chip_gen: v5e
topology: v5e:2x2
jax: 0.10.0
libtpu: 0.0.40
codegen_flags: <defaults>
</compile_context>

<pallas_src>
import jax
import jax.numpy as jnp
from jax.experimental import pallas as pl
from jax.experimental.pallas import tpu as pltpu

_LANES = 128


def _hsigmoid_kernel(x_ref, o_ref):
    # relu6(x + 3) / 6 == clamp(x + 3, 0, 6) * (1/6); compute in f32 (free — memory bound).
    x = x_ref[...].astype(jnp.float32)
    y = jnp.minimum(jnp.maximum(x + 3.0, 0.0), 6.0) * (1.0 / 6.0)
    o_ref[...] = y.astype(o_ref.dtype)


def _hsigmoid_jnp(x):
    xf = x.astype(jnp.float32)
    return (jnp.clip(xf + 3.0, 0.0, 6.0) * (1.0 / 6.0)).astype(x.dtype)


def _is_v7_tpu() -> bool:
    try:
        kind = jax.devices()[0].device_kind.lower()
    except Exception:
        return False
    return ("v7" in kind) or ("7x" in kind)


def _round_up(a: int, m: int) -> int:
    return pl.cdiv(a, m) * m


def _run_hsigmoid_2d(x2d: jax.Array, *, donate: bool) -> jax.Array:
    rows = x2d.shape[0]
    dtype = x2d.dtype
    itemsize = jnp.dtype(dtype).itemsize

    # Native packed sublane quantum: 8 for f32, 16 for bf16/f16, 32 for int8/fp8.
    q = max(8, 32 // itemsize)

    is_v7 = _is_v7_tpu()
    target_bytes = (4 << 20) if is_v7 else (2 << 20)  # constant block *bytes* per dtype
    br = max(q, (target_bytes // (_LANES * itemsize)) // q * q)

    rows_rounded = _round_up(rows, q)
    br = min(br, rows_rounded)
    if is_v7 and rows_rounded > q:
        # Ensure >= 2 grid blocks so the "parallel" axis actually lands on both TensorCores.
        br = min(br, max(q, _round_up(pl.cdiv(rows_rounded, 2), q)))

    grid = (pl.cdiv(rows, br),)

    n = rows * _LANES
    cost = pl.CostEstimate(
        flops=4 * n,                    # add, max, min, mul per element
        transcendentals=0,
        bytes_accessed=2 * n * itemsize,  # exactly one read + one write of the kernel's data
    )

    kwargs = {}
    if donate:
        # Only beneficial if the caller actually donates the input buffer; otherwise XLA
        # inserts a defensive copy. Off by default.
        kwargs["input_output_aliases"] = {0: 0}

    return pl.pallas_call(
        _hsigmoid_kernel,
        out_shape=jax.ShapeDtypeStruct((rows, _LANES), dtype),
        grid=grid,
        in_specs=[pl.BlockSpec((br, _LANES), lambda i: (i, 0))],
        out_specs=pl.BlockSpec((br, _LANES), lambda i: (i, 0)),
        compiler_params=pltpu.CompilerParams(
            dimension_semantics=("parallel",),
        ),
        cost_estimate=cost,
        **kwargs,
    )(x2d)


def hsigmoid(x: jax.Array, *, donate: bool = False) -> jax.Array:
    """Elementwise hard-sigmoid matching F.relu6(x + 3) / 6."""
    orig_shape = x.shape
    n = x.size
    if n == 0:
        return x

    x_flat = x.reshape(-1)
    rem = n % _LANES

    if rem == 0:
        # Aligned: zero-copy reshape, no padding, ragged last grid block masked by Pallas.
        out2d = _run_hsigmoid_2d(x_flat.reshape(n // _LANES, _LANES), donate=donate)
        return out2d.reshape(orig_shape)

    # Misaligned: run the kernel on the aligned prefix, compute the <=127-element tail in
    # plain jnp. Avoids the old whole-array pad + slice HBM passes.
    n_main = n - rem
    if n_main == 0:
        return _hsigmoid_jnp(x_flat).reshape(orig_shape)
    main = _run_hsigmoid_2d(
        x_flat[:n_main].reshape(n_main // _LANES, _LANES), donate=False
    ).reshape(-1)
    tail = _hsigmoid_jnp(x_flat[n_main:])
    return jnp.concatenate([main, tail]).reshape(orig_shape)


def hsigmoid_ref(x: jax.Array) -> jax.Array:
    xf = x.astype(jnp.float32)
    return (jnp.clip(xf + 3.0, 0.0, 6.0) / 6.0).astype(x.dtype)


if __name__ == "__main__":
    key = jax.random.PRNGKey(0)

    # NCHW, small shapes consistent with the module's usage (lane-aligned: 2*4*16*16 = 2048).
    x = jax.random.normal(key, (2, 4, 16, 16), dtype=jnp.float32) * 4.0
    out = jax.block_until_ready(hsigmoid(x))
    ref = hsigmoid_ref(x)
    assert out.shape == x.shape and out.dtype == x.dtype
    assert jnp.allclose(out, ref, atol=1e-6), "mismatch vs reference (f32 aligned)"

    # Misaligned element count (1155 = 9*128 + 3) exercises the prefix + jnp-tail path.
    x2 = jax.random.normal(jax.random.PRNGKey(1), (3, 5, 7, 11), dtype=jnp.float32) * 4.0
    out2 = jax.block_until_ready(hsigmoid(x2))
    assert jnp.allclose(out2, hsigmoid_ref(x2), atol=1e-6), "mismatch vs reference (tail)"

    # bf16 exercises the dtype-aware sublane quantum / block sizing.
    x3 = (jax.random.normal(jax.random.PRNGKey(2), (2, 4, 16, 16), dtype=jnp.float32) * 4.0
          ).astype(jnp.bfloat16)
    out3 = jax.block_until_ready(hsigmoid(x3))
    ref3 = hsigmoid_ref(x3)
    assert out3.dtype == jnp.bfloat16
    assert jnp.allclose(out3.astype(jnp.float32), ref3.astype(jnp.float32), atol=1e-2), \
        "mismatch vs reference (bf16)"

    print("KERNEL_OK")
</pallas_src>

<mosaic_0001>
module attributes {stable_mosaic.version = 11 : i64} {
  func.func @_hsigmoid_kernel(%arg0: i32, %arg1: memref<16x128xf32, #tpu.memory_space<vmem>>, %arg2: memref<16x128xf32, #tpu.memory_space<vmem>>) attributes {dimension_semantics = [#tpu.dimension_semantics<parallel>], iteration_bounds = array<i64: 1>, scalar_prefetch = 0 : i64, scratch_operands = 0 : i64, tpu.core_type = #tpu.core_type<tc>, window_params = [{transform_indices = @transform_0, window_bounds = array<i64: 16, 128>}, {transform_indices = @transform_1, window_bounds = array<i64: 16, 128>}]} {
    %c0 = arith.constant 0 : index
    %c0_0 = arith.constant 0 : index
    %0 = vector.load %arg1[%c0, %c0_0] : memref<16x128xf32, #tpu.memory_space<vmem>>, vector<16x128xf32>
    %cst = arith.constant 3.000000e+00 : f32
    %1 = vector.broadcast %cst : f32 to vector<16x128xf32>
    %2 = arith.addf %0, %1 : vector<16x128xf32>
    %cst_1 = arith.constant 0.000000e+00 : f32
    %3 = vector.broadcast %cst_1 : f32 to vector<16x128xf32>
    %4 = arith.maximumf %2, %3 : vector<16x128xf32>
    %cst_2 = arith.constant 6.000000e+00 : f32
    %5 = vector.broadcast %cst_2 : f32 to vector<16x128xf32>
    %6 = arith.minimumf %4, %5 : vector<16x128xf32>
    %cst_3 = arith.constant 0.166666672 : f32
    %7 = vector.broadcast %cst_3 : f32 to vector<16x128xf32>
    %8 = arith.mulf %6, %7 : vector<16x128xf32>
    %c0_4 = arith.constant 0 : index
    %c0_5 = arith.constant 0 : index
    %9 = vector.load %arg2[%c0_4, %c0_5] : memref<16x128xf32, #tpu.memory_space<vmem>>, vector<16x128xf32>
    tpu.vector_store %arg2[%c0_4, %c0_5], %8 {strides = array<i32>} : memref<16x128xf32, #tpu.memory_space<vmem>>, vector<16x128xf32>,
    return
  }
  func.func @transform_0(%arg0: i32) -> (i32, i32) {
    %c0_i32 = arith.constant 0 : i32
    %c0_i32_0 = arith.constant 0 : i32
    return %arg0, %c0_i32 : i32, i32
  }
  func.func @transform_1(%arg0: i32) -> (i32, i32) {
    %c0_i32 = arith.constant 0 : i32
    %c0_i32_0 = arith.constant 0 : i32
    return %arg0, %c0_i32 : i32, i32
  }
}

</mosaic_0001>

<llo_original>
// kernel: tpu_custom_call.1
$region0: #{tpu_custom_call.1}
  #allocation0 [shape = 'u32[]', space=smem, size = 0x4, offset = 0x4, fixed_abs, tag = 'smem constant byte address 0x4 - core index']
  #allocation1 [shape = 'u32[72,128]{1,0:T(1,128)}', space=vmem, size = 0x9000, scoped, tag = 'internal scratch']
  %s0 = inlined_call_operand.hbm [shape: f32[16,128], index: 0, kind: input, shape index: {}]
  %s1 = inlined_call_operand.hbm [shape: f32[16,128], index: 1, kind: output, shape index: {}]
  %s2 = sld [smem:[#allocation0]]
  $region18: #{tpu_custom_call.1} parent=0
    _
  %s4 = ssub.s32 1, %s2
  %s5 = scalar_select 0, %s4, %s2
  $region1: #{tpu_custom_call.1} parent=0
    #allocation2 [shape = 'u8[8192]{0}', space=vmem, size = 0x2000, scoped, tag = 'input window, operand 0, single buffered']
    #allocation3 [shape = 's32[1]{0}', space=sflag, size = 0x4, scoped, tag = 'scoped memory for tpu_custom_call.1']
    #allocation4 [shape = 's32[1]{0}', space=sflag, size = 0x4, scoped, tag = 'scoped memory for tpu_custom_call.1']
    #allocation5 [shape = 'u8[8192]{0}', space=vmem, size = 0x2000, scoped, tag = 'output window, operand 0, single buffered']
    %6 = vsyncpa [#allocation3], 0
    %7 = vsyncpa [#allocation4], 0
    // Predicated region
    $region2: #{tpu_custom_call.1} parent=1 // pred_check
      _
    $region3: #{tpu_custom_call.1} parent=1 // pred_check_branch
      %9 = sbr.rel (0) target = $region5
    $region4: #{tpu_custom_call.1} parent=1 // pred_region
      %11 = vsyncadd [#allocation3], 0
      %s12 = sshll.u32 %s0, 4
      %s13 = int_to_ptr.hbm [resolvable:$true] %s12
      %s14 = sshll.u32 [#allocation2], 4
      %s15 = int_to_ptr.vmem [resolvable:$true] %s14
      %20 = dma.hbm_to_vmem [thread:$0]  %s13, 256, %s15, [#allocation3], 128, 128, 8
    $region5: #{tpu_custom_call.1} parent=1 // pred_fallthru
      _
    // Predicated region
    $region6: #{tpu_custom_call.1} parent=1 // pred_check
      _
    $region7: #{tpu_custom_call.1} parent=1 // pred_check_branch
      %22 = sbr.rel (0) target = $region9
    $region8: #{tpu_custom_call.1} parent=1 // pred_region
      %24 = dma.done [#allocation3], 256
    $region9: #{tpu_custom_call.1} parent=1 // pred_fallthru
      _
    %v25 = vld [vmem:[#allocation2] sm:$0xff]
    %v26 = vld [vmem:[#allocation2 + $0x8] sm:$0xff]
    %v27 = vadd.f32 %v25, 3.0
    %v28 = vadd.f32 %v26, 3.0
    %v29 = vmax.f32 %v27, 0.0
    %v30 = vmax.f32 %v28, 0.0
    %v31 = vmin.f32 %v29, 6.0
    %v32 = vmin.f32 %v30, 6.0
    %v33 = vmul.f32 %v31, 0.16666667
    %v34 = vmul.f32 %v32, 0.16666667
    %35 = vst [vmem:[#allocation5] sm:$0xff] %v33
    %36 = vst [vmem:[#allocation5 + $0x8] sm:$0xff] %v34
    // Predicated region
    $region10: #{tpu_custom_call.1} parent=1 // pred_check
      _
    $region11: #{tpu_custom_call.1} parent=1 // pred_check_branch
      %38 = sbr.rel (0) target = $region13
    $region12: #{tpu_custom_call.1} parent=1 // pred_region
      %40 = vsyncadd [#allocation4], 0
      %s41 = sshll.u32 [#allocation5], 4
      %s42 = int_to_ptr.vmem [resolvable:$true] %s41
      %s43 = sshll.u32 %s1, 4
      %s44 = int_to_ptr.hbm [resolvable:$true] %s43
      %49 = dma.vmem_to_hbm [thread:$0]  %s42, 256, %s44, [#allocation4], 128, 128, 8
    $region13: #{tpu_custom_call.1} parent=1 // pred_fallthru
      _
    // Predicated region
    $region14: #{tpu_custom_call.1} parent=1 // pred_check
      _
    $region15: #{tpu_custom_call.1} parent=1 // pred_check_branch
      %51 = sbr.rel (0) target = $region17
    $region16: #{tpu_custom_call.1} parent=1 // pred_region
      %53 = dma.done [#allocation4], 256
    $region17: #{tpu_custom_call.1} parent=1 // pred_fallthru
      _
    %54 = vsyncpa [#allocation3], 1
    %55 = vsyncpa [#allocation4], 1

</llo_original>
